<compile_context>
chip_gen: v7x
topology: tpu7x:2x2x1
jax: 0.10.0
libtpu: 0.0.40
codegen_flags: <defaults>
</compile_context>

<pallas_src>
import functools
import math

import jax
import jax.numpy as jnp
from jax import lax
from jax.experimental import pallas as pl
from jax.experimental.pallas import tpu as pltpu


def am_softmax_kernel(x_ref, wt_ref, labels_ref, out_ref, *, m, s, eps):
    x = x_ref[...].astype(jnp.float32)        # (B, D)
    wt = wt_ref[...].astype(jnp.float32)      # (D, N)  weight pre-transposed in wrapper
    labels = labels_ref[...]                  # (B, 1) int32

    b = x.shape[0]
    n = wt.shape[1]

    # --- F.normalize(x, p=2, dim=1)  (torch clamps the norm at 1e-12) ---
    x_norm = jnp.sqrt(jnp.sum(x * x, axis=1, keepdims=True))
    xn = x / jnp.maximum(x_norm, 1e-12)

    # --- weight.div_(norm(weight, dim=1, keepdim=True)) ---
    # With W stored (D, N) this is a sublane (axis=0) reduction; the matmul
    # below then feeds the MXU directly (no vxpose round-trip).
    w_norm = jnp.sqrt(jnp.sum(wt * wt, axis=0, keepdims=True))   # (1, N)
    wn = wt / w_norm

    # --- cos_angle = xn @ wn  (bf16 MXU inputs, f32 accumulation) ---
    cos = jnp.dot(xn.astype(jnp.bfloat16), wn.astype(jnp.bfloat16),
                  preferred_element_type=jnp.float32)            # (B, N)
    cos = jnp.clip(cos, -1.0, 1.0)

    # --- margin at the label column + scale, fused into one select ---
    col_ids = lax.broadcasted_iota(jnp.int32, (b, n), 1)
    is_label = col_ids == labels                                  # (B, N) bool
    logits = jnp.where(is_label, s * (cos - m), s * cos)

    # --- CrossEntropyLabelSmooth without materializing (B,N) targets ---
    #   log_probs = shifted - lse
    #   row_loss  = -(1-eps)*log_probs[label] - (eps/N)*sum(log_probs)
    #             = lse - (1-eps)*shifted[label] - (eps/N)*sum(shifted)
    mx = jnp.max(logits, axis=1, keepdims=True)
    shifted = logits - mx
    lse = jnp.log(jnp.sum(jnp.exp(shifted), axis=1, keepdims=True))   # (B, 1)
    sh_label = jnp.sum(jnp.where(is_label, shifted, 0.0),
                       axis=1, keepdims=True)                         # (B, 1)
    sum_shifted = jnp.sum(shifted, axis=1, keepdims=True)             # (B, 1)
    row_loss = lse - (1.0 - eps) * sh_label - (eps / n) * sum_shifted # (B, 1)

    total = jnp.sum(row_loss, axis=0, keepdims=True)                  # (1, 1)
    # (1,1) VMEM scalar output: the masked single-lane store + 1-lane writeback
    # is negligible at this size (accepted per perf review).
    out_ref[...] = total / b


def am_softmax_v1_loss(x, weight, labels, *, m=0.35, s=10.0, epsilon=0.1):
    """x: (B, D) f32, weight: (N, D) f32 (nn.Linear layout), labels: (B,) int -> scalar loss."""
    b, d = x.shape
    n = weight.shape[0]
    labels2d = labels.astype(jnp.int32).reshape(b, 1)
    wt = weight.T   # one-time (N,D)->(D,N) transpose outside the kernel

    # TODO(synk): for large N/B, switch to a class-tiled grid with an online
    # log-sum-exp accumulator (flash-softmax style) and v7x-aware tile sizes.
    kernel = functools.partial(am_softmax_kernel, m=float(m), s=float(s),
                               eps=float(epsilon))
    out = pl.pallas_call(
        kernel,
        out_shape=jax.ShapeDtypeStruct((1, 1), jnp.float32),
        in_specs=[
            pl.BlockSpec(memory_space=pltpu.VMEM),   # x      (B, D)
            pl.BlockSpec(memory_space=pltpu.VMEM),   # weight (D, N)
            pl.BlockSpec(memory_space=pltpu.VMEM),   # labels (B, 1)
        ],
        out_specs=pl.BlockSpec(memory_space=pltpu.VMEM),
    )(x, wt, labels2d)
    return out[0, 0]


def _reference_loss(x, weight, labels, *, m=0.35, s=10.0, epsilon=0.1):
    """Pure-JAX (f32) reference mirroring the PyTorch forward."""
    xn = x / jnp.maximum(jnp.linalg.norm(x, axis=1, keepdims=True), 1e-12)
    wn = weight / jnp.linalg.norm(weight, axis=1, keepdims=True)
    cos = jnp.clip(xn @ wn.T, -1.0, 1.0)
    b, n = cos.shape
    onehot = jax.nn.one_hot(labels, n, dtype=jnp.float32)
    logits = s * (cos - m * onehot)
    log_probs = jax.nn.log_softmax(logits, axis=1)
    targets = (1.0 - epsilon) * onehot + epsilon / n
    return jnp.sum(jnp.mean(-targets * log_probs, axis=0))


if __name__ == "__main__":
    # Small shapes consistent with the module: features (B, D), labels (B,)
    B, D, N = 8, 128, 30
    key = jax.random.PRNGKey(0)
    kx, kw, kl = jax.random.split(key, 3)

    x = jax.random.normal(kx, (B, D), dtype=jnp.float32)
    labels = jax.random.randint(kl, (B,), 0, N, dtype=jnp.int32)

    # Deterministic init matching nn.init.uniform_(weight, -bound, bound),
    # bound = 1/sqrt(d); weight shape (num_classes, d) as in nn.Linear.
    bound = 1.0 / math.sqrt(D)
    weight = jax.random.uniform(kw, (N, D), dtype=jnp.float32,
                                minval=-bound, maxval=bound)

    loss = jax.block_until_ready(am_softmax_v1_loss(x, weight, labels))
    ref = jax.block_until_ready(_reference_loss(x, weight, labels))

    # Tolerance loosened vs. the f32 reference because the matmul inputs are
    # bf16 (f32 accumulation); with unit-norm cosines, s=10, m=0.35 this is ample.
    assert jnp.allclose(loss, ref, rtol=1e-2, atol=1e-2), (loss, ref)

    print("KERNEL_OK")
</pallas_src>

<mosaic_0001>
module attributes {stable_mosaic.version = 11 : i64} {
  func.func @am_softmax_kernel(%arg0: memref<8x128xf32, #tpu.memory_space<vmem>>, %arg1: memref<128x30xf32, #tpu.memory_space<vmem>>, %arg2: memref<8x1xi32, #tpu.memory_space<vmem>>, %arg3: memref<1x1xf32, #tpu.memory_space<vmem>>) attributes {dimension_semantics = [], scalar_prefetch = 0 : i64, scratch_operands = 0 : i64, tpu.core_type = #tpu.core_type<tc>} {
    %c0 = arith.constant 0 : index
    %c0_0 = arith.constant 0 : index
    %0 = vector.load %arg0[%c0, %c0_0] : memref<8x128xf32, #tpu.memory_space<vmem>>, vector<8x128xf32>
    %c0_1 = arith.constant 0 : index
    %c0_2 = arith.constant 0 : index
    %1 = vector.load %arg1[%c0_1, %c0_2] : memref<128x30xf32, #tpu.memory_space<vmem>>, vector<128x30xf32>
    %c0_3 = arith.constant 0 : index
    %c0_4 = arith.constant 0 : index
    %2 = vector.load %arg2[%c0_3, %c0_4] : memref<8x1xi32, #tpu.memory_space<vmem>>, vector<8x1xi32>
    %3 = arith.mulf %0, %0 : vector<8x128xf32>
    %cst = arith.constant dense<0.000000e+00> : vector<8xf32>
    %4 = vector.multi_reduction <add>, %3, %cst [1] : vector<8x128xf32> to vector<8xf32>
    %5 = vector.shape_cast %4 : vector<8xf32> to vector<8x1xf32>
    %6 = math.sqrt %5 : vector<8x1xf32>
    %cst_5 = arith.constant 9.99999996E-13 : f32
    %7 = vector.broadcast %cst_5 : f32 to vector<8x1xf32>
    %8 = arith.maximumf %6, %7 : vector<8x1xf32>
    %9 = vector.broadcast %8 : vector<8x1xf32> to vector<8x128xf32>
    %10 = arith.divf %0, %9 : vector<8x128xf32>
    %11 = arith.mulf %1, %1 : vector<128x30xf32>
    %cst_6 = arith.constant dense<0.000000e+00> : vector<30xf32>
    %12 = vector.multi_reduction <add>, %11, %cst_6 [0] : vector<128x30xf32> to vector<30xf32>
    %13 = vector.shape_cast %12 : vector<30xf32> to vector<1x30xf32>
    %14 = math.sqrt %13 : vector<1x30xf32>
    %15 = vector.broadcast %14 : vector<1x30xf32> to vector<128x30xf32>
    %16 = arith.divf %1, %15 : vector<128x30xf32>
    %17 = arith.truncf %10 : vector<8x128xf32> to vector<8x128xbf16>
    %18 = arith.truncf %16 : vector<128x30xf32> to vector<128x30xbf16>
    %cst_7 = arith.constant dense<0.000000e+00> : vector<8x30xf32>
    %19 = tpu.matmul %17, %18, %cst_7 {dimension_numbers = #tpu.dot_dimension_numbers<[1], [0], [0], [1], [0, 0, 1, 1], [], []>} : vector<8x128xbf16>, vector<128x30xbf16>, vector<8x30xf32> -> vector<8x30xf32>
    %cst_8 = arith.constant -1.000000e+00 : f32
    %cst_9 = arith.constant 1.000000e+00 : f32
    %20 = vector.broadcast %cst_8 : f32 to vector<8x30xf32>
    %21 = arith.maximumf %20, %19 : vector<8x30xf32>
    %22 = vector.broadcast %cst_9 : f32 to vector<8x30xf32>
    %23 = arith.minimumf %22, %21 : vector<8x30xf32>
    %24 = tpu.iota {dimensions = array<i32: 1>} : vector<8x30xi32>
    %25 = vector.broadcast %2 : vector<8x1xi32> to vector<8x30xi32>
    %26 = arith.cmpi eq, %24, %25 : vector<8x30xi32>
    %cst_10 = arith.constant 3.500000e-01 : f32
    %27 = vector.broadcast %cst_10 : f32 to vector<8x30xf32>
    %28 = arith.subf %23, %27 : vector<8x30xf32>
    %cst_11 = arith.constant 1.000000e+01 : f32
    %29 = vector.broadcast %cst_11 : f32 to vector<8x30xf32>
    %30 = arith.mulf %29, %28 : vector<8x30xf32>
    %cst_12 = arith.constant 1.000000e+01 : f32
    %31 = vector.broadcast %cst_12 : f32 to vector<8x30xf32>
    %32 = arith.mulf %31, %23 : vector<8x30xf32>
    %33 = arith.select %26, %30, %32 : vector<8x30xi1>, vector<8x30xf32>
    %cst_13 = arith.constant dense<0xFF800000> : vector<8xf32>
    %34 = vector.multi_reduction <maximumf>, %33, %cst_13 [1] : vector<8x30xf32> to vector<8xf32>
    %35 = vector.shape_cast %34 : vector<8xf32> to vector<8x1xf32>
    %36 = vector.broadcast %35 : vector<8x1xf32> to vector<8x30xf32>
    %37 = arith.subf %33, %36 : vector<8x30xf32>
    %38 = math.exp %37 : vector<8x30xf32>
    %cst_14 = arith.constant dense<0.000000e+00> : vector<8xf32>
    %39 = vector.multi_reduction <add>, %38, %cst_14 [1] : vector<8x30xf32> to vector<8xf32>
    %40 = vector.shape_cast %39 : vector<8xf32> to vector<8x1xf32>
    %41 = math.log %40 : vector<8x1xf32>
    %cst_15 = arith.constant 0.000000e+00 : f32
    %42 = vector.broadcast %cst_15 : f32 to vector<8x30xf32>
    %43 = arith.select %26, %37, %42 : vector<8x30xi1>, vector<8x30xf32>
    %cst_16 = arith.constant dense<0.000000e+00> : vector<8xf32>
    %44 = vector.multi_reduction <add>, %43, %cst_16 [1] : vector<8x30xf32> to vector<8xf32>
    %45 = vector.shape_cast %44 : vector<8xf32> to vector<8x1xf32>
    %cst_17 = arith.constant dense<0.000000e+00> : vector<8xf32>
    %46 = vector.multi_reduction <add>, %37, %cst_17 [1] : vector<8x30xf32> to vector<8xf32>
    %47 = vector.shape_cast %46 : vector<8xf32> to vector<8x1xf32>
    %cst_18 = arith.constant 0.899999976 : f32
    %48 = vector.broadcast %cst_18 : f32 to vector<8x1xf32>
    %49 = arith.mulf %48, %45 : vector<8x1xf32>
    %50 = arith.subf %41, %49 : vector<8x1xf32>
    %cst_19 = arith.constant 0.00333333341 : f32
    %51 = vector.broadcast %cst_19 : f32 to vector<8x1xf32>
    %52 = arith.mulf %51, %47 : vector<8x1xf32>
    %53 = arith.subf %50, %52 : vector<8x1xf32>
    %cst_20 = arith.constant dense<0.000000e+00> : vector<1xf32>
    %54 = vector.multi_reduction <add>, %53, %cst_20 [0] : vector<8x1xf32> to vector<1xf32>
    %55 = vector.shape_cast %54 : vector<1xf32> to vector<1x1xf32>
    %cst_21 = arith.constant 8.000000e+00 : f32
    %56 = vector.broadcast %cst_21 : f32 to vector<1x1xf32>
    %57 = arith.divf %55, %56 : vector<1x1xf32>
    %c0_22 = arith.constant 0 : index
    %c0_23 = arith.constant 0 : index
    %58 = vector.load %arg3[%c0_22, %c0_23] : memref<1x1xf32, #tpu.memory_space<vmem>>, vector<1x1xf32>
    tpu.vector_store %arg3[%c0_22, %c0_23], %57 {strides = array<i32>} : memref<1x1xf32, #tpu.memory_space<vmem>>, vector<1x1xf32>,
    return
  }
}

</mosaic_0001>

<llo_original>
// kernel: tpu_custom_call.1
$region0: #{tpu_custom_call.1}
  #allocation0 [shape = 'u32[]', space=smem, size = 0x4, offset = 0x4, fixed_abs, tag = 'smem constant byte address 0x4 - core index']
  #allocation1 [shape = 'u32[144,128]{1,0:T(1,128)}', space=vmem, size = 0x12000, scoped, tag = 'internal scratch']
  %s0 = inlined_call_operand.vmem [shape: f32[8,128], index: 0, kind: input, shape index: {}]
  %s1 = inlined_call_operand.vmem [shape: f32[128,30], index: 1, kind: input, shape index: {}]
  %s2 = inlined_call_operand.vmem [shape: s32[8,1], index: 2, kind: input, shape index: {}]
  %s3 = inlined_call_operand.hbm [shape: f32[1,1], index: 3, kind: output, shape index: {}]
  %s4 = sld [smem:[#allocation0]]
  $region22: #{tpu_custom_call.1} parent=0
    _
  %s6 = ssub.s32 1, %s4
  %s7 = scalar_select 0, %s6, %s4
  $region1: #{tpu_custom_call.1} parent=0
    #allocation2 [shape = 'u8[512]{0}', space=vmem, size = 0x400, scoped, tag = 'output window, operand 0, single buffered']
    #allocation3 [shape = 's32[1]{0}', space=sflag, size = 0x4, scoped, tag = 'scoped memory for tpu_custom_call.1']
    %8 = vsyncpa [#allocation3], 0
    // Predicated region
    $region2: #{tpu_custom_call.1} parent=1 // pred_check
      _
    $region3: #{tpu_custom_call.1} parent=1 // pred_check_branch
      %10 = sbr.rel (0) target = $region5
    $region4: #{tpu_custom_call.1} parent=1 // pred_region
      _
    $region5: #{tpu_custom_call.1} parent=1 // pred_fallthru
      _
    // Predicated region
    $region6: #{tpu_custom_call.1} parent=1 // pred_check
      _
    $region7: #{tpu_custom_call.1} parent=1 // pred_check_branch
      %12 = sbr.rel (0) target = $region9
    $region8: #{tpu_custom_call.1} parent=1 // pred_region
      _
    $region9: #{tpu_custom_call.1} parent=1 // pred_fallthru
      _
    // Predicated region
    $region10: #{tpu_custom_call.1} parent=1 // pred_check
      _
    $region11: #{tpu_custom_call.1} parent=1 // pred_check_branch
      %14 = sbr.rel (0) target = $region13
    $region12: #{tpu_custom_call.1} parent=1 // pred_region
      _
    $region13: #{tpu_custom_call.1} parent=1 // pred_fallthru
      _
    %v16 = vld [vmem:[%s0] sm:$0xff]
    %v17 = vld [vmem:[%s1] sm:$0xff]
    %v18 = vld [vmem:[%s1 + $0x8] sm:$0xff]
    %v19 = vld [vmem:[%s1 + $0x10] sm:$0xff]
    %v20 = vld [vmem:[%s1 + $0x18] sm:$0xff]
    %v21 = vld [vmem:[%s1 + $0x20] sm:$0xff]
    %v22 = vld [vmem:[%s1 + $0x28] sm:$0xff]
    %v23 = vld [vmem:[%s1 + $0x30] sm:$0xff]
    %v24 = vld [vmem:[%s1 + $0x38] sm:$0xff]
    %v25 = vld [vmem:[%s1 + $0x40] sm:$0xff]
    %v26 = vld [vmem:[%s1 + $0x48] sm:$0xff]
    %v27 = vld [vmem:[%s1 + $0x50] sm:$0xff]
    %v28 = vld [vmem:[%s1 + $0x58] sm:$0xff]
    %v29 = vld [vmem:[%s1 + $0x60] sm:$0xff]
    %v30 = vld [vmem:[%s1 + $0x68] sm:$0xff]
    %v31 = vld [vmem:[%s1 + $0x70] sm:$0xff]
    %v32 = vld [vmem:[%s1 + $0x78] sm:$0xff]
    %v33 = vld [vmem:[%s2] sm:$0xff]
    %v34 = vmul.f32 %v16, %v16
    %35 = vadd.xlane.f32.xlu0 %v34
    %v36 = vpop.xlane.xlu0 %35
    %v37 = vrsqrt.pop %v36
    %v38 = vmul.f32 %v36, %v37
    %vm39 = vcmp.eq.f32.partialorder %v36, inf
    %v40 = vsel %vm39, %v36, %v38
    %vm41 = vcmp.eq.f32.partialorder %v36, 0.0
    %v42 = vand.u32 %v36, 2147483648
    %v43 = vsel %vm41, %v42, %v40
    %v44 = vmax.f32 %v43, 1e-12
    %v45 = vrcp.pop %v44
    %v46 = vmul.f32 %v16, %v45
    %v47 = vmul.f32 %v17, %v17
    %v48 = vmul.f32 %v18, %v18
    %v49 = vmul.f32 %v19, %v19
    %v50 = vmul.f32 %v20, %v20
    %v51 = vmul.f32 %v21, %v21
    %v52 = vmul.f32 %v22, %v22
    %v53 = vmul.f32 %v23, %v23
    %v54 = vmul.f32 %v24, %v24
    %v55 = vmul.f32 %v25, %v25
    %v56 = vmul.f32 %v26, %v26
    %v57 = vmul.f32 %v27, %v27
    %v58 = vmul.f32 %v28, %v28
    %v59 = vmul.f32 %v29, %v29
    %v60 = vmul.f32 %v30, %v30
    %v61 = vmul.f32 %v31, %v31
    %v62 = vmul.f32 %v32, %v32
    %vm63 = vcmask 244736
    %v64 = vsel %vm63, %v47, 0.0
    %v65 = vsel %vm63, %v48, 0.0
    %v66 = vadd.f32 %v64, %v65
    %v67 = vsel %vm63, %v49, 0.0
    %v68 = vadd.f32 %v66, %v67
    %v69 = vsel %vm63, %v50, 0.0
    %v70 = vadd.f32 %v68, %v69
    %v71 = vsel %vm63, %v51, 0.0
    %v72 = vadd.f32 %v70, %v71
    %v73 = vsel %vm63, %v52, 0.0
    %v74 = vadd.f32 %v72, %v73
    %v75 = vsel %vm63, %v53, 0.0
    %v76 = vadd.f32 %v74, %v75
    %v77 = vsel %vm63, %v54, 0.0
    %v78 = vadd.f32 %v76, %v77
    %v79 = vsel %vm63, %v55, 0.0
    %v80 = vadd.f32 %v78, %v79
    %v81 = vsel %vm63, %v56, 0.0
    %v82 = vadd.f32 %v80, %v81
    %v83 = vsel %vm63, %v57, 0.0
    %v84 = vadd.f32 %v82, %v83
    %v85 = vsel %vm63, %v58, 0.0
    %v86 = vadd.f32 %v84, %v85
    %v87 = vsel %vm63, %v59, 0.0
    %v88 = vadd.f32 %v86, %v87
    %v89 = vsel %vm63, %v60, 0.0
    %v90 = vadd.f32 %v88, %v89
    %v91 = vsel %vm63, %v61, 0.0
    %v92 = vadd.f32 %v90, %v91
    %v93 = vsel %vm63, %v62, 0.0
    %v94 = vadd.f32 %v92, %v93
    %v95 = vrot.slane %v94, 4
    %v96 = vadd.f32 %v94, %v95
    %v97 = vrot.slane %v96, 2
    %v98 = vadd.f32 %v96, %v97
    %v99 = vrot.slane %v98, 1
    %v100 = vadd.f32 %v98, %v99
    %v101 = vrsqrt.pop %v100
    %v102 = vmul.f32 %v100, %v101
    %vm103 = vcmp.eq.f32.partialorder %v100, inf
    %v104 = vsel %vm103, %v100, %v102
    %vm105 = vcmp.eq.f32.partialorder %v100, 0.0
    %v106 = vand.u32 %v100, 2147483648
    %v107 = vsel %vm105, %v106, %v104
    %v108 = vrcp.pop %v107
    %v109 = vmul.f32 %v17, %v108
    %v110 = vmul.f32 %v18, %v108
    %v111 = vmul.f32 %v19, %v108
    %v112 = vmul.f32 %v20, %v108
    %v113 = vmul.f32 %v21, %v108
    %v114 = vmul.f32 %v22, %v108
    %v115 = vmul.f32 %v23, %v108
    %v116 = vmul.f32 %v24, %v108
    %v117 = vmul.f32 %v25, %v108
    %v118 = vmul.f32 %v26, %v108
    %v119 = vmul.f32 %v27, %v108
    %v120 = vmul.f32 %v28, %v108
    %v121 = vmul.f32 %v29, %v108
    %v122 = vmul.f32 %v30, %v108
    %v123 = vmul.f32 %v31, %v108
    %v124 = vmul.f32 %v32, %v108
    %v125 = vpack.c.bf16 %v46, %v46
    %v126 = vpack.c.bf16 %v110, %v109
    %v127 = vpack.c.bf16 %v112, %v111
    %v128 = vpack.c.bf16 %v114, %v113
    %v129 = vpack.c.bf16 %v116, %v115
    %v130 = vpack.c.bf16 %v118, %v117
    %v131 = vpack.c.bf16 %v120, %v119
    %v132 = vpack.c.bf16 %v122, %v121
    %v133 = vpack.c.bf16 %v124, %v123
    %134 = vmatprep.subr.bf16.mxu0 0
    %135 = vmatpush1.bf16.msra.mxu0 %v126
    %136 = vmatprep.subr.bf16.mxu0 0
    %137 = vmatpush1.bf16.msra.mxu0 %v127
    %138 = vmatprep.subr.bf16.mxu0 0
    %139 = vmatpush1.bf16.msra.mxu0 %v128
    %140 = vmatprep.subr.bf16.mxu0 0
    %141 = vmatpush1.bf16.msra.mxu0 %v129
    %142 = vmatprep.subr.bf16.mxu0 0
    %143 = vmatpush1.bf16.msra.mxu0 %v130
    %144 = vmatprep.subr.bf16.mxu0 0
    %145 = vmatpush1.bf16.msra.mxu0 %v131
    %146 = vmatprep.subr.bf16.mxu0 0
    %147 = vmatpush1.bf16.msra.mxu0 %v132
    %148 = vmatprep.subr.bf16.mxu0 0
    %149 = vmatpush1.bf16.msra.mxu0 %v133
    %150 = vmatprep.subr.bf16.mxu0 0
    %151 = vmatpush1.bf16.msra.mxu0 0
    %152 = vmatprep.subr.bf16.mxu0 0
    %153 = vmatpush1.bf16.msra.mxu0 0
    %154 = vmatprep.subr.bf16.mxu0 0
    %155 = vmatpush1.bf16.msra.mxu0 0
    %156 = vmatprep.subr.bf16.mxu0 0
    %157 = vmatpush1.bf16.msra.mxu0 0
    %158 = vmatprep.subr.bf16.mxu0 0
    %159 = vmatpush1.bf16.msra.mxu0 0
    %160 = vmatprep.subr.bf16.mxu0 0
    %161 = vmatpush1.bf16.msra.mxu0 0
    %162 = vmatprep.subr.bf16.mxu0 0
    %163 = vmatpush1.bf16.msra.mxu0 0
    %164 = vmatprep.subr.bf16.mxu0 0
    %165 = vmatpush1.bf16.msra.mxu0 0
    %166 = vmatprep.mubr.bf16.mxu0 0
    %167 = vmatmul.mubr.bf16.gmra.mrb[0].mxu0 %v125
    %v168 = vpop.f32.mrb[0].mxu0
    %v169 = vadd.f32 0.0, %v168
    %v170 = vpop.f32.mrb[0].mxu0
    %v171 = vpop.f32.mrb[0].mxu0
    %v172 = vpop.f32.mrb[0].mxu0
    %173 = vdwg.mxu0
    %v174 = vmax.f32 %v169, -1.0
    %v175 = vmin.f32 %v174, 1.0
    %v176 = vlaneseq
    %v177 = vand.u32 %v176, 127
    %178 = vset.pattern.permute.xlu0 0
    %179 = vperm.xlu0 %178, %v33
    %v180 = vpop.permute.xlu0 %179
    %vm181 = vcmp.eq.s32.totalorder %v177, %v180
    %v182 = vsub.f32 %v175, 0.35
    %v183 = vmul.f32 %v182, 10.0
    %v184 = vmul.f32 %v175, 10.0
    %v185 = vsel %vm181, %v183, %v184
    %v186 = vsel %vm63, %v185, -inf
    %187 = vmax.xlane.f32.xlu0 %v186
    %v188 = vpop.xlane.xlu0 %187
    %v189 = vsub.f32 %v185, %v188
    %v190 = vmul.f32 %v189, 1.442695
    %v191 = vpow.pop %v190
    %v192 = vsel %vm63, %v191, 0.0
    %193 = vadd.xlane.f32.xlu0 %v192
    %v194 = vpop.xlane.xlu0 %193
    %v195 = vlog2.pop %v194
    %v196 = vmul.f32 %v195, 0.6931472
    %v197 = vsel %vm181, %v189, 0.0
    %v198 = vsel %vm63, %v197, 0.0
    %199 = vadd.xlane.f32.xlu0 %v198
    %v200 = vpop.xlane.xlu0 %199
    %v201 = vsel %vm63, %v189, 0.0
    %202 = vadd.xlane.f32.xlu0 %v201
    %v203 = vpop.xlane.xlu0 %202
    %v204 = vmul.f32 %v200, 0.9
    %v205 = vsub.f32 %v196, %v204
    %v206 = vmul.f32 %v203, 0.0033333334
    %v207 = vsub.f32 %v205, %v206
    %v208 = vrot.slane %v207, 4
    %v209 = vadd.f32 %v207, %v208
    %v210 = vrot.slane %v209, 2
    %v211 = vadd.f32 %v209, %v210
    %v212 = vrot.slane %v211, 1
    %v213 = vadd.f32 %v211, %v212
    %v214 = vrcp.pop 8.0
    %v215 = vmul.f32 %v213, %v214
    %vm216 = vcmask 0
    %217 = vst.msk [vmem:[#allocation2] sm:$0x1] %vm216, %v215
    // Predicated region
    $region14: #{tpu_custom_call.1} parent=1 // pred_check
      _
    $region15: #{tpu_custom_call.1} parent=1 // pred_check_branch
      %219 = sbr.rel (0) target = $region17
    $region16: #{tpu_custom_call.1} parent=1 // pred_region
      %s221 = ssub.s32 16, 16
      %222 = vsyncadd [#allocation3], %s221
      %s224 = sshll.u32 [#allocation2], 4
      %s225 = int_to_ptr.vmem [resolvable:$true] %s224
      %227 = dma.vmem_to_hbm [thread:$0]  %s225, 16, %s3, [#allocation3]
    $region17: #{tpu_custom_call.1} parent=1 // pred_fallthru
      _
    // Predicated region
    $region18: #{tpu_custom_call.1} parent=1 // pred_check
      _
    $region19: #{tpu_custom_call.1} parent=1 // pred_check_branch
      %229 = sbr.rel (0) target = $region21
    $region20: #{tpu_custom_call.1} parent=1 // pred_region
      %230 = dma.done [#allocation3], 16
    $region21: #{tpu_custom_call.1} parent=1 // pred_fallthru
      _
    %231 = vsyncpa [#allocation3], 1

</llo_original>
